<compile_context>
chip_gen: v7x
topology: tpu7x:2x2x1
jax: 0.10.0
libtpu: 0.0.40
codegen_flags: <defaults>
</compile_context>

<pallas_src>
import functools

import jax
import jax.numpy as jnp
from jax import lax
from jax.experimental import pallas as pl
from jax.experimental.pallas import tpu as pltpu


def _fused_sigmoid(v):
    # sigmoid(v) == 0.5 * tanh(0.5 * v) + 0.5 : single EUP push per vreg plus
    # VALU mul/add (avoids exp + divide on the single-slot EUP path).
    return 0.5 * jnp.tanh(0.5 * v) + 0.5


def gan_disc_kernel(x_ref, wihx_ref, whh_ref, bias_ref, wext_ref, bext_ref,
                    packed_ref, xg_ref, *, num_classes, bp):
    SBp, _ = x_ref.shape               # time-major rows, batch padded to bp
    S = SBp // bp
    H = whh_ref.shape[0]               # hidden size (whh is (H, 4H) == W_hh^T)

    # Hoisted input projection: ONE dense (S*Bp, F) @ (F, 4H) matmul with the
    # (b_ih + b_hh + mean-term) already folded into bias_ref by the wrapper.
    # Written once to VMEM scratch -- no reshapes, per-step slabs are aligned
    # dynamic sublane slices of this ref.
    xg_ref[...] = (jnp.dot(x_ref[...], wihx_ref[...],
                           preferred_element_type=jnp.float32)
                   + bias_ref[...])

    whh = whh_ref[...]                 # (H, 4H) == W_hh^T, gate cols [i|f|o|g]

    def step(t, carry):
        h, c, acc = carry
        row = pl.multiple_of(t * bp, 8)
        # Only the recurrent matmul remains on the serial path.
        gates = xg_ref[pl.ds(row, bp), :] + jnp.dot(
            h.astype(whh.dtype), whh, preferred_element_type=jnp.float32)
        # Gate order pre-permuted to [i | f | o | g] by the wrapper: sigmoid
        # touches only the first 3H lanes, tanh only the last H lanes.
        sg = _fused_sigmoid(gates[:, :3 * H])
        g_g = jnp.tanh(gates[:, 3 * H:4 * H])
        i_g = sg[:, 0 * H:1 * H]
        f_g = sg[:, 1 * H:2 * H]
        o_g = sg[:, 2 * H:3 * H]
        c_new = f_g * c + i_g * g_g
        h_new = o_g * jnp.tanh(c_new)
        return h_new, c_new, acc + h_new      # acc = running einsum 'bsh->bh'

    zeros = jnp.zeros((bp, H), jnp.float32)
    _, _, acc = lax.fori_loop(0, S, step, (zeros, zeros, zeros), unroll=True)

    # Lane-dense packed output: z[:, :C] = sigmoid(logits @ W_out^T + b_out),
    # z[:, C:C+H] = logits via the identity block of wext.  One MXU op, one
    # EUP pass, one unmasked full-width 128-lane store.
    z = (jnp.dot(acc.astype(wext_ref.dtype), wext_ref[...],
                 preferred_element_type=jnp.float32)
         + bext_ref[...])
    lane = lax.broadcasted_iota(jnp.int32, z.shape, 1)
    packed_ref[...] = jnp.where(lane < num_classes, _fused_sigmoid(z), z)


def gan_discriminator(x, params, *, matmul_dtype=jnp.float32):
    """x: (B, S, F) float32 with F = hidden_size // 2. Returns (output, logits).

    matmul_dtype=jnp.bfloat16 casts MXU operands (x, W_ih, W_hh, W_out) to
    bf16 with f32 accumulation; gate / cell / accumulator math stays f32.
    """
    B, S, F = x.shape
    H = params["w_hh"].shape[1]
    C = params["w_out"].shape[0]
    Bp = max(8, ((B + 7) // 8) * 8)          # pad batch to a sublane multiple
    OUT_LANES = 128                          # lane-dense packed output width
    assert C + H <= OUT_LANES

    # torch.mean(x): scalar mean over the *real* (unpadded) elements.
    mean_val = jnp.mean(x)

    # Gate-column permutation: PyTorch order [i|f|g|o] -> [i|f|o|g] so the
    # kernel can sigmoid the first 3H lanes and tanh only the last H lanes.
    perm = jnp.concatenate([jnp.arange(0, 2 * H),
                            jnp.arange(3 * H, 4 * H),
                            jnp.arange(2 * H, 3 * H)])

    # Fold the time-invariant mean-feature half and both biases into one
    # effective bias:  concat([x_t, mean*1], -1) @ W_ih^T
    #   == x_t @ W_ih[:, :F]^T + mean * sum_k W_ih[:, F+k]^T + b_ih + b_hh
    bias_full = (params["b_ih"] + params["b_hh"]
                 + mean_val * jnp.sum(params["w_ih"][:, F:], axis=1))
    bias_eff = bias_full[perm].reshape(1, 4 * H).astype(jnp.float32)

    w_ih_x = params["w_ih"][perm, :F].T.astype(matmul_dtype)   # (F, 4H)
    w_hh_t = params["w_hh"][perm].T.astype(matmul_dtype)       # (H, 4H)

    # Extended output projection [W_out^T | I_H | 0] -> single packed output.
    w_ext = jnp.zeros((H, OUT_LANES), jnp.float32)
    w_ext = w_ext.at[:, :C].set(params["w_out"].T)
    w_ext = w_ext.at[:, C:C + H].set(jnp.eye(H, dtype=jnp.float32))
    w_ext = w_ext.astype(matmul_dtype)
    b_ext = jnp.zeros((1, OUT_LANES), jnp.float32).at[0, :C].set(params["b_out"])

    # Time-major, batch padded with zeros (rows are independent), flattened to
    # (S*Bp, F) so the kernel never reshapes.  TODO(synk): at production scale
    # this transpose+pad copy is removed by an S-chunked grid whose x BlockSpec
    # index_map reads time-major blocks straight from the original HBM layout.
    x_tm = jnp.transpose(x, (1, 0, 2))                   # (S, B, F)
    x_tm = jnp.pad(x_tm, ((0, 0), (0, Bp - B), (0, 0)))  # (S, Bp, F)
    x_flat = x_tm.reshape(S * Bp, F).astype(matmul_dtype)

    vmem = pl.BlockSpec(memory_space=pltpu.MemorySpace.VMEM)
    packed = pl.pallas_call(
        functools.partial(gan_disc_kernel, num_classes=C, bp=Bp),
        out_shape=jax.ShapeDtypeStruct((Bp, OUT_LANES), jnp.float32),
        in_specs=[vmem] * 6,
        out_specs=vmem,
        scratch_shapes=[pltpu.VMEM((S * Bp, 4 * H), jnp.float32)],
    )(x_flat, w_ih_x, w_hh_t, bias_eff, w_ext, b_ext)

    out = packed[:B, :C]                  # sigmoid(Linear(logits))
    logits = packed[:B, C:C + H]          # logits = sum_t h_t
    return out, logits


def reference(x, params):
    """Pure-JAX reference with identical semantics (for validation)."""
    B, S, F = x.shape
    H = params["w_hh"].shape[1]
    mean_val = jnp.mean(x)
    inputs = jnp.concatenate([x, jnp.full((B, S, F), mean_val)], axis=2)  # (B,S,2F)

    wih_t = params["w_ih"].T
    whh_t = params["w_hh"].T
    bias = params["b_ih"] + params["b_hh"]

    def step(carry, x_t):
        h, c = carry
        gates = x_t @ wih_t + h @ whh_t + bias
        i_g = jax.nn.sigmoid(gates[:, 0 * H:1 * H])
        f_g = jax.nn.sigmoid(gates[:, 1 * H:2 * H])
        g_g = jnp.tanh(gates[:, 2 * H:3 * H])
        o_g = jax.nn.sigmoid(gates[:, 3 * H:4 * H])
        c = f_g * c + i_g * g_g
        h = o_g * jnp.tanh(c)
        return (h, c), h

    zeros = jnp.zeros((B, H), jnp.float32)
    (_, _), hs = lax.scan(step, (zeros, zeros), jnp.transpose(inputs, (1, 0, 2)))
    logits = jnp.sum(hs, axis=0)                              # einsum 'bsh->bh'
    out = jax.nn.sigmoid(logits @ params["w_out"].T + params["b_out"])
    return out, logits


if __name__ == "__main__":
    # config: hidden_size=32, classification_size=4, batch_size=2, seq=8
    B, S, H, C = 2, 8, 32, 4
    F = H // 2

    key = jax.random.PRNGKey(0)
    ks = jax.random.split(key, 7)
    bound = 1.0 / (H ** 0.5)
    params = {
        "w_ih":  jax.random.uniform(ks[0], (4 * H, H), jnp.float32, -bound, bound),
        "w_hh":  jax.random.uniform(ks[1], (4 * H, H), jnp.float32, -bound, bound),
        "b_ih":  jax.random.uniform(ks[2], (4 * H,),   jnp.float32, -bound, bound),
        "b_hh":  jax.random.uniform(ks[3], (4 * H,),   jnp.float32, -bound, bound),
        "w_out": jax.random.uniform(ks[4], (C, H),     jnp.float32, -bound, bound),
        "b_out": jax.random.uniform(ks[5], (C,),       jnp.float32, -bound, bound),
    }
    x = jax.random.normal(ks[6], (B, S, F), jnp.float32)

    out_ref, logits_ref = reference(x, params)

    # f32 MXU path: tight check against the reference semantics.
    out, logits = gan_discriminator(x, params, matmul_dtype=jnp.float32)
    jax.block_until_ready((out, logits))
    assert jnp.allclose(out, out_ref, atol=1e-4), "output mismatch (f32)"
    assert jnp.allclose(logits, logits_ref, atol=1e-4), "logits mismatch (f32)"

    # bf16 MXU path (production setting): loose numerical check, same shapes.
    out_bf, logits_bf = gan_discriminator(x, params, matmul_dtype=jnp.bfloat16)
    jax.block_until_ready((out_bf, logits_bf))
    assert jnp.allclose(out_bf, out_ref, atol=1e-1), "output mismatch (bf16)"
    assert jnp.allclose(logits_bf, logits_ref, atol=1e-1), "logits mismatch (bf16)"

    print("KERNEL_OK")
</pallas_src>

<mosaic_0001>
module attributes {stable_mosaic.version = 11 : i64} {
  func.func @gan_disc_kernel(%arg0: memref<64x16xf32, #tpu.memory_space<vmem>>, %arg1: memref<16x128xf32, #tpu.memory_space<vmem>>, %arg2: memref<32x128xf32, #tpu.memory_space<vmem>>, %arg3: memref<1x128xf32, #tpu.memory_space<vmem>>, %arg4: memref<32x128xf32, #tpu.memory_space<vmem>>, %arg5: memref<1x128xf32, #tpu.memory_space<vmem>>, %arg6: memref<8x128xf32, #tpu.memory_space<vmem>>, %arg7: memref<64x128xf32, #tpu.memory_space<vmem>>) attributes {dimension_semantics = [], scalar_prefetch = 0 : i64, scratch_operands = 1 : i64, tpu.core_type = #tpu.core_type<tc>} {
    %c0 = arith.constant 0 : index
    %c0_0 = arith.constant 0 : index
    %0 = vector.load %arg0[%c0, %c0_0] : memref<64x16xf32, #tpu.memory_space<vmem>>, vector<64x16xf32>
    %c0_1 = arith.constant 0 : index
    %c0_2 = arith.constant 0 : index
    %1 = vector.load %arg1[%c0_1, %c0_2] : memref<16x128xf32, #tpu.memory_space<vmem>>, vector<16x128xf32>
    %cst = arith.constant dense<0.000000e+00> : vector<64x128xf32>
    %2 = tpu.matmul %0, %1, %cst {dimension_numbers = #tpu.dot_dimension_numbers<[1], [0], [0], [1], [0, 0, 1, 1], [], []>} : vector<64x16xf32>, vector<16x128xf32>, vector<64x128xf32> -> vector<64x128xf32>
    %c0_3 = arith.constant 0 : index
    %c0_4 = arith.constant 0 : index
    %3 = vector.load %arg3[%c0_3, %c0_4] : memref<1x128xf32, #tpu.memory_space<vmem>>, vector<1x128xf32>
    %4 = vector.broadcast %3 : vector<1x128xf32> to vector<64x128xf32>
    %5 = arith.addf %2, %4 : vector<64x128xf32>
    %c0_5 = arith.constant 0 : index
    %c0_6 = arith.constant 0 : index
    %6 = vector.load %arg7[%c0_5, %c0_6] : memref<64x128xf32, #tpu.memory_space<vmem>>, vector<64x128xf32>
    tpu.vector_store %arg7[%c0_5, %c0_6], %5 {strides = array<i32>} : memref<64x128xf32, #tpu.memory_space<vmem>>, vector<64x128xf32>,
    %c0_7 = arith.constant 0 : index
    %c0_8 = arith.constant 0 : index
    %7 = vector.load %arg2[%c0_7, %c0_8] : memref<32x128xf32, #tpu.memory_space<vmem>>, vector<32x128xf32>
    %cst_9 = arith.constant 0.000000e+00 : f32
    %8 = vector.broadcast %cst_9 : f32 to vector<8x32xf32>
    %c0_i32 = arith.constant 0 : i32
    %c8_i32 = arith.constant 8 : i32
    %9 = arith.muli %c0_i32, %c8_i32 : i32
    %10 = tpu.assume_multiple %9, 8 : i32
    %11 = arith.index_cast %10 : i32 to index
    %c0_10 = arith.constant 0 : index
    %12 = vector.load %arg7[%11, %c0_10] : memref<64x128xf32, #tpu.memory_space<vmem>>, vector<8x128xf32>
    %cst_11 = arith.constant dense<0.000000e+00> : vector<8x128xf32>
    %13 = tpu.matmul %8, %7, %cst_11 {dimension_numbers = #tpu.dot_dimension_numbers<[1], [0], [0], [1], [0, 0, 1, 1], [], []>} : vector<8x32xf32>, vector<32x128xf32>, vector<8x128xf32> -> vector<8x128xf32>
    %14 = arith.addf %12, %13 : vector<8x128xf32>
    %15 = vector.extract_strided_slice %14 {offsets = [0, 0], sizes = [8, 96], strides = [1, 1]} : vector<8x128xf32> to vector<8x96xf32>
    %cst_12 = arith.constant 5.000000e-01 : f32
    %16 = vector.broadcast %cst_12 : f32 to vector<8x96xf32>
    %17 = arith.mulf %16, %15 : vector<8x96xf32>
    %18 = math.tanh %17 : vector<8x96xf32>
    %cst_13 = arith.constant 5.000000e-01 : f32
    %19 = vector.broadcast %cst_13 : f32 to vector<8x96xf32>
    %20 = arith.mulf %19, %18 : vector<8x96xf32>
    %cst_14 = arith.constant 5.000000e-01 : f32
    %21 = vector.broadcast %cst_14 : f32 to vector<8x96xf32>
    %22 = arith.addf %20, %21 : vector<8x96xf32>
    %23 = vector.extract_strided_slice %14 {offsets = [0, 96], sizes = [8, 32], strides = [1, 1]} : vector<8x128xf32> to vector<8x32xf32>
    %24 = math.tanh %23 : vector<8x32xf32>
    %25 = vector.extract_strided_slice %22 {offsets = [0, 0], sizes = [8, 32], strides = [1, 1]} : vector<8x96xf32> to vector<8x32xf32>
    %26 = vector.extract_strided_slice %22 {offsets = [0, 32], sizes = [8, 32], strides = [1, 1]} : vector<8x96xf32> to vector<8x32xf32>
    %27 = vector.extract_strided_slice %22 {offsets = [0, 64], sizes = [8, 32], strides = [1, 1]} : vector<8x96xf32> to vector<8x32xf32>
    %28 = arith.mulf %26, %8 : vector<8x32xf32>
    %29 = arith.mulf %25, %24 : vector<8x32xf32>
    %30 = arith.addf %28, %29 : vector<8x32xf32>
    %31 = math.tanh %30 : vector<8x32xf32>
    %32 = arith.mulf %27, %31 : vector<8x32xf32>
    %33 = arith.addf %8, %32 : vector<8x32xf32>
    %c1_i32 = arith.constant 1 : i32
    %c8_i32_15 = arith.constant 8 : i32
    %34 = arith.muli %c1_i32, %c8_i32_15 : i32
    %35 = tpu.assume_multiple %34, 8 : i32
    %36 = arith.index_cast %35 : i32 to index
    %c0_16 = arith.constant 0 : index
    %37 = vector.load %arg7[%36, %c0_16] : memref<64x128xf32, #tpu.memory_space<vmem>>, vector<8x128xf32>
    %cst_17 = arith.constant dense<0.000000e+00> : vector<8x128xf32>
    %38 = tpu.matmul %32, %7, %cst_17 {dimension_numbers = #tpu.dot_dimension_numbers<[1], [0], [0], [1], [0, 0, 1, 1], [], []>} : vector<8x32xf32>, vector<32x128xf32>, vector<8x128xf32> -> vector<8x128xf32>
    %39 = arith.addf %37, %38 : vector<8x128xf32>
    %40 = vector.extract_strided_slice %39 {offsets = [0, 0], sizes = [8, 96], strides = [1, 1]} : vector<8x128xf32> to vector<8x96xf32>
    %cst_18 = arith.constant 5.000000e-01 : f32
    %41 = vector.broadcast %cst_18 : f32 to vector<8x96xf32>
    %42 = arith.mulf %41, %40 : vector<8x96xf32>
    %43 = math.tanh %42 : vector<8x96xf32>
    %cst_19 = arith.constant 5.000000e-01 : f32
    %44 = vector.broadcast %cst_19 : f32 to vector<8x96xf32>
    %45 = arith.mulf %44, %43 : vector<8x96xf32>
    %cst_20 = arith.constant 5.000000e-01 : f32
    %46 = vector.broadcast %cst_20 : f32 to vector<8x96xf32>
    %47 = arith.addf %45, %46 : vector<8x96xf32>
    %48 = vector.extract_strided_slice %39 {offsets = [0, 96], sizes = [8, 32], strides = [1, 1]} : vector<8x128xf32> to vector<8x32xf32>
    %49 = math.tanh %48 : vector<8x32xf32>
    %50 = vector.extract_strided_slice %47 {offsets = [0, 0], sizes = [8, 32], strides = [1, 1]} : vector<8x96xf32> to vector<8x32xf32>
    %51 = vector.extract_strided_slice %47 {offsets = [0, 32], sizes = [8, 32], strides = [1, 1]} : vector<8x96xf32> to vector<8x32xf32>
    %52 = vector.extract_strided_slice %47 {offsets = [0, 64], sizes = [8, 32], strides = [1, 1]} : vector<8x96xf32> to vector<8x32xf32>
    %53 = arith.mulf %51, %30 : vector<8x32xf32>
    %54 = arith.mulf %50, %49 : vector<8x32xf32>
    %55 = arith.addf %53, %54 : vector<8x32xf32>
    %56 = math.tanh %55 : vector<8x32xf32>
    %57 = arith.mulf %52, %56 : vector<8x32xf32>
    %58 = arith.addf %33, %57 : vector<8x32xf32>
    %c2_i32 = arith.constant 2 : i32
    %c8_i32_21 = arith.constant 8 : i32
    %59 = arith.muli %c2_i32, %c8_i32_21 : i32
    %60 = tpu.assume_multiple %59, 8 : i32
    %61 = arith.index_cast %60 : i32 to index
    %c0_22 = arith.constant 0 : index
    %62 = vector.load %arg7[%61, %c0_22] : memref<64x128xf32, #tpu.memory_space<vmem>>, vector<8x128xf32>
    %cst_23 = arith.constant dense<0.000000e+00> : vector<8x128xf32>
    %63 = tpu.matmul %57, %7, %cst_23 {dimension_numbers = #tpu.dot_dimension_numbers<[1], [0], [0], [1], [0, 0, 1, 1], [], []>} : vector<8x32xf32>, vector<32x128xf32>, vector<8x128xf32> -> vector<8x128xf32>
    %64 = arith.addf %62, %63 : vector<8x128xf32>
    %65 = vector.extract_strided_slice %64 {offsets = [0, 0], sizes = [8, 96], strides = [1, 1]} : vector<8x128xf32> to vector<8x96xf32>
    %cst_24 = arith.constant 5.000000e-01 : f32
    %66 = vector.broadcast %cst_24 : f32 to vector<8x96xf32>
    %67 = arith.mulf %66, %65 : vector<8x96xf32>
    %68 = math.tanh %67 : vector<8x96xf32>
    %cst_25 = arith.constant 5.000000e-01 : f32
    %69 = vector.broadcast %cst_25 : f32 to vector<8x96xf32>
    %70 = arith.mulf %69, %68 : vector<8x96xf32>
    %cst_26 = arith.constant 5.000000e-01 : f32
    %71 = vector.broadcast %cst_26 : f32 to vector<8x96xf32>
    %72 = arith.addf %70, %71 : vector<8x96xf32>
    %73 = vector.extract_strided_slice %64 {offsets = [0, 96], sizes = [8, 32], strides = [1, 1]} : vector<8x128xf32> to vector<8x32xf32>
    %74 = math.tanh %73 : vector<8x32xf32>
    %75 = vector.extract_strided_slice %72 {offsets = [0, 0], sizes = [8, 32], strides = [1, 1]} : vector<8x96xf32> to vector<8x32xf32>
    %76 = vector.extract_strided_slice %72 {offsets = [0, 32], sizes = [8, 32], strides = [1, 1]} : vector<8x96xf32> to vector<8x32xf32>
    %77 = vector.extract_strided_slice %72 {offsets = [0, 64], sizes = [8, 32], strides = [1, 1]} : vector<8x96xf32> to vector<8x32xf32>
    %78 = arith.mulf %76, %55 : vector<8x32xf32>
    %79 = arith.mulf %75, %74 : vector<8x32xf32>
    %80 = arith.addf %78, %79 : vector<8x32xf32>
    %81 = math.tanh %80 : vector<8x32xf32>
    %82 = arith.mulf %77, %81 : vector<8x32xf32>
    %83 = arith.addf %58, %82 : vector<8x32xf32>
    %c3_i32 = arith.constant 3 : i32
    %c8_i32_27 = arith.constant 8 : i32
    %84 = arith.muli %c3_i32, %c8_i32_27 : i32
    %85 = tpu.assume_multiple %84, 8 : i32
    %86 = arith.index_cast %85 : i32 to index
    %c0_28 = arith.constant 0 : index
    %87 = vector.load %arg7[%86, %c0_28] : memref<64x128xf32, #tpu.memory_space<vmem>>, vector<8x128xf32>
    %cst_29 = arith.constant dense<0.000000e+00> : vector<8x128xf32>
    %88 = tpu.matmul %82, %7, %cst_29 {dimension_numbers = #tpu.dot_dimension_numbers<[1], [0], [0], [1], [0, 0, 1, 1], [], []>} : vector<8x32xf32>, vector<32x128xf32>, vector<8x128xf32> -> vector<8x128xf32>
    %89 = arith.addf %87, %88 : vector<8x128xf32>
    %90 = vector.extract_strided_slice %89 {offsets = [0, 0], sizes = [8, 96], strides = [1, 1]} : vector<8x128xf32> to vector<8x96xf32>
    %cst_30 = arith.constant 5.000000e-01 : f32
    %91 = vector.broadcast %cst_30 : f32 to vector<8x96xf32>
    %92 = arith.mulf %91, %90 : vector<8x96xf32>
    %93 = math.tanh %92 : vector<8x96xf32>
    %cst_31 = arith.constant 5.000000e-01 : f32
    %94 = vector.broadcast %cst_31 : f32 to vector<8x96xf32>
    %95 = arith.mulf %94, %93 : vector<8x96xf32>
    %cst_32 = arith.constant 5.000000e-01 : f32
    %96 = vector.broadcast %cst_32 : f32 to vector<8x96xf32>
    %97 = arith.addf %95, %96 : vector<8x96xf32>
    %98 = vector.extract_strided_slice %89 {offsets = [0, 96], sizes = [8, 32], strides = [1, 1]} : vector<8x128xf32> to vector<8x32xf32>
    %99 = math.tanh %98 : vector<8x32xf32>
    %100 = vector.extract_strided_slice %97 {offsets = [0, 0], sizes = [8, 32], strides = [1, 1]} : vector<8x96xf32> to vector<8x32xf32>
    %101 = vector.extract_strided_slice %97 {offsets = [0, 32], sizes = [8, 32], strides = [1, 1]} : vector<8x96xf32> to vector<8x32xf32>
    %102 = vector.extract_strided_slice %97 {offsets = [0, 64], sizes = [8, 32], strides = [1, 1]} : vector<8x96xf32> to vector<8x32xf32>
    %103 = arith.mulf %101, %80 : vector<8x32xf32>
    %104 = arith.mulf %100, %99 : vector<8x32xf32>
    %105 = arith.addf %103, %104 : vector<8x32xf32>
    %106 = math.tanh %105 : vector<8x32xf32>
    %107 = arith.mulf %102, %106 : vector<8x32xf32>
    %108 = arith.addf %83, %107 : vector<8x32xf32>
    %c4_i32 = arith.constant 4 : i32
    %c8_i32_33 = arith.constant 8 : i32
    %109 = arith.muli %c4_i32, %c8_i32_33 : i32
    %110 = tpu.assume_multiple %109, 8 : i32
    %111 = arith.index_cast %110 : i32 to index
    %c0_34 = arith.constant 0 : index
    %112 = vector.load %arg7[%111, %c0_34] : memref<64x128xf32, #tpu.memory_space<vmem>>, vector<8x128xf32>
    %cst_35 = arith.constant dense<0.000000e+00> : vector<8x128xf32>
    %113 = tpu.matmul %107, %7, %cst_35 {dimension_numbers = #tpu.dot_dimension_numbers<[1], [0], [0], [1], [0, 0, 1, 1], [], []>} : vector<8x32xf32>, vector<32x128xf32>, vector<8x128xf32> -> vector<8x128xf32>
    %114 = arith.addf %112, %113 : vector<8x128xf32>
    %115 = vector.extract_strided_slice %114 {offsets = [0, 0], sizes = [8, 96], strides = [1, 1]} : vector<8x128xf32> to vector<8x96xf32>
    %cst_36 = arith.constant 5.000000e-01 : f32
    %116 = vector.broadcast %cst_36 : f32 to vector<8x96xf32>
    %117 = arith.mulf %116, %115 : vector<8x96xf32>
    %118 = math.tanh %117 : vector<8x96xf32>
    %cst_37 = arith.constant 5.000000e-01 : f32
    %119 = vector.broadcast %cst_37 : f32 to vector<8x96xf32>
    %120 = arith.mulf %119, %118 : vector<8x96xf32>
    %cst_38 = arith.constant 5.000000e-01 : f32
    %121 = vector.broadcast %cst_38 : f32 to vector<8x96xf32>
    %122 = arith.addf %120, %121 : vector<8x96xf32>
    %123 = vector.extract_strided_slice %114 {offsets = [0, 96], sizes = [8, 32], strides = [1, 1]} : vector<8x128xf32> to vector<8x32xf32>
    %124 = math.tanh %123 : vector<8x32xf32>
    %125 = vector.extract_strided_slice %122 {offsets = [0, 0], sizes = [8, 32], strides = [1, 1]} : vector<8x96xf32> to vector<8x32xf32>
    %126 = vector.extract_strided_slice %122 {offsets = [0, 32], sizes = [8, 32], strides = [1, 1]} : vector<8x96xf32> to vector<8x32xf32>
    %127 = vector.extract_strided_slice %122 {offsets = [0, 64], sizes = [8, 32], strides = [1, 1]} : vector<8x96xf32> to vector<8x32xf32>
    %128 = arith.mulf %126, %105 : vector<8x32xf32>
    %129 = arith.mulf %125, %124 : vector<8x32xf32>
    %130 = arith.addf %128, %129 : vector<8x32xf32>
    %131 = math.tanh %130 : vector<8x32xf32>
    %132 = arith.mulf %127, %131 : vector<8x32xf32>
    %133 = arith.addf %108, %132 : vector<8x32xf32>
    %c5_i32 = arith.constant 5 : i32
    %c8_i32_39 = arith.constant 8 : i32
    %134 = arith.muli %c5_i32, %c8_i32_39 : i32
    %135 = tpu.assume_multiple %134, 8 : i32
    %136 = arith.index_cast %135 : i32 to index
    %c0_40 = arith.constant 0 : index
    %137 = vector.load %arg7[%136, %c0_40] : memref<64x128xf32, #tpu.memory_space<vmem>>, vector<8x128xf32>
    %cst_41 = arith.constant dense<0.000000e+00> : vector<8x128xf32>
    %138 = tpu.matmul %132, %7, %cst_41 {dimension_numbers = #tpu.dot_dimension_numbers<[1], [0], [0], [1], [0, 0, 1, 1], [], []>} : vector<8x32xf32>, vector<32x128xf32>, vector<8x128xf32> -> vector<8x128xf32>
    %139 = arith.addf %137, %138 : vector<8x128xf32>
    %140 = vector.extract_strided_slice %139 {offsets = [0, 0], sizes = [8, 96], strides = [1, 1]} : vector<8x128xf32> to vector<8x96xf32>
    %cst_42 = arith.constant 5.000000e-01 : f32
    %141 = vector.broadcast %cst_42 : f32 to vector<8x96xf32>
    %142 = arith.mulf %141, %140 : vector<8x96xf32>
    %143 = math.tanh %142 : vector<8x96xf32>
    %cst_43 = arith.constant 5.000000e-01 : f32
    %144 = vector.broadcast %cst_43 : f32 to vector<8x96xf32>
    %145 = arith.mulf %144, %143 : vector<8x96xf32>
    %cst_44 = arith.constant 5.000000e-01 : f32
    %146 = vector.broadcast %cst_44 : f32 to vector<8x96xf32>
    %147 = arith.addf %145, %146 : vector<8x96xf32>
    %148 = vector.extract_strided_slice %139 {offsets = [0, 96], sizes = [8, 32], strides = [1, 1]} : vector<8x128xf32> to vector<8x32xf32>
    %149 = math.tanh %148 : vector<8x32xf32>
    %150 = vector.extract_strided_slice %147 {offsets = [0, 0], sizes = [8, 32], strides = [1, 1]} : vector<8x96xf32> to vector<8x32xf32>
    %151 = vector.extract_strided_slice %147 {offsets = [0, 32], sizes = [8, 32], strides = [1, 1]} : vector<8x96xf32> to vector<8x32xf32>
    %152 = vector.extract_strided_slice %147 {offsets = [0, 64], sizes = [8, 32], strides = [1, 1]} : vector<8x96xf32> to vector<8x32xf32>
    %153 = arith.mulf %151, %130 : vector<8x32xf32>
    %154 = arith.mulf %150, %149 : vector<8x32xf32>
    %155 = arith.addf %153, %154 : vector<8x32xf32>
    %156 = math.tanh %155 : vector<8x32xf32>
    %157 = arith.mulf %152, %156 : vector<8x32xf32>
    %158 = arith.addf %133, %157 : vector<8x32xf32>
    %c6_i32 = arith.constant 6 : i32
    %c8_i32_45 = arith.constant 8 : i32
    %159 = arith.muli %c6_i32, %c8_i32_45 : i32
    %160 = tpu.assume_multiple %159, 8 : i32
    %161 = arith.index_cast %160 : i32 to index
    %c0_46 = arith.constant 0 : index
    %162 = vector.load %arg7[%161, %c0_46] : memref<64x128xf32, #tpu.memory_space<vmem>>, vector<8x128xf32>
    %cst_47 = arith.constant dense<0.000000e+00> : vector<8x128xf32>
    %163 = tpu.matmul %157, %7, %cst_47 {dimension_numbers = #tpu.dot_dimension_numbers<[1], [0], [0], [1], [0, 0, 1, 1], [], []>} : vector<8x32xf32>, vector<32x128xf32>, vector<8x128xf32> -> vector<8x128xf32>
    %164 = arith.addf %162, %163 : vector<8x128xf32>
    %165 = vector.extract_strided_slice %164 {offsets = [0, 0], sizes = [8, 96], strides = [1, 1]} : vector<8x128xf32> to vector<8x96xf32>
    %cst_48 = arith.constant 5.000000e-01 : f32
    %166 = vector.broadcast %cst_48 : f32 to vector<8x96xf32>
    %167 = arith.mulf %166, %165 : vector<8x96xf32>
    %168 = math.tanh %167 : vector<8x96xf32>
    %cst_49 = arith.constant 5.000000e-01 : f32
    %169 = vector.broadcast %cst_49 : f32 to vector<8x96xf32>
    %170 = arith.mulf %169, %168 : vector<8x96xf32>
    %cst_50 = arith.constant 5.000000e-01 : f32
    %171 = vector.broadcast %cst_50 : f32 to vector<8x96xf32>
    %172 = arith.addf %170, %171 : vector<8x96xf32>
    %173 = vector.extract_strided_slice %164 {offsets = [0, 96], sizes = [8, 32], strides = [1, 1]} : vector<8x128xf32> to vector<8x32xf32>
    %174 = math.tanh %173 : vector<8x32xf32>
    %175 = vector.extract_strided_slice %172 {offsets = [0, 0], sizes = [8, 32], strides = [1, 1]} : vector<8x96xf32> to vector<8x32xf32>
    %176 = vector.extract_strided_slice %172 {offsets = [0, 32], sizes = [8, 32], strides = [1, 1]} : vector<8x96xf32> to vector<8x32xf32>
    %177 = vector.extract_strided_slice %172 {offsets = [0, 64], sizes = [8, 32], strides = [1, 1]} : vector<8x96xf32> to vector<8x32xf32>
    %178 = arith.mulf %176, %155 : vector<8x32xf32>
    %179 = arith.mulf %175, %174 : vector<8x32xf32>
    %180 = arith.addf %178, %179 : vector<8x32xf32>
    %181 = math.tanh %180 : vector<8x32xf32>
    %182 = arith.mulf %177, %181 : vector<8x32xf32>
    %183 = arith.addf %158, %182 : vector<8x32xf32>
    %c7_i32 = arith.constant 7 : i32
    %c8_i32_51 = arith.constant 8 : i32
    %184 = arith.muli %c7_i32, %c8_i32_51 : i32
    %185 = tpu.assume_multiple %184, 8 : i32
    %186 = arith.index_cast %185 : i32 to index
    %c0_52 = arith.constant 0 : index
    %187 = vector.load %arg7[%186, %c0_52] : memref<64x128xf32, #tpu.memory_space<vmem>>, vector<8x128xf32>
    %cst_53 = arith.constant dense<0.000000e+00> : vector<8x128xf32>
    %188 = tpu.matmul %182, %7, %cst_53 {dimension_numbers = #tpu.dot_dimension_numbers<[1], [0], [0], [1], [0, 0, 1, 1], [], []>} : vector<8x32xf32>, vector<32x128xf32>, vector<8x128xf32> -> vector<8x128xf32>
    %189 = arith.addf %187, %188 : vector<8x128xf32>
    %190 = vector.extract_strided_slice %189 {offsets = [0, 0], sizes = [8, 96], strides = [1, 1]} : vector<8x128xf32> to vector<8x96xf32>
    %cst_54 = arith.constant 5.000000e-01 : f32
    %191 = vector.broadcast %cst_54 : f32 to vector<8x96xf32>
    %192 = arith.mulf %191, %190 : vector<8x96xf32>
    %193 = math.tanh %192 : vector<8x96xf32>
    %cst_55 = arith.constant 5.000000e-01 : f32
    %194 = vector.broadcast %cst_55 : f32 to vector<8x96xf32>
    %195 = arith.mulf %194, %193 : vector<8x96xf32>
    %cst_56 = arith.constant 5.000000e-01 : f32
    %196 = vector.broadcast %cst_56 : f32 to vector<8x96xf32>
    %197 = arith.addf %195, %196 : vector<8x96xf32>
    %198 = vector.extract_strided_slice %189 {offsets = [0, 96], sizes = [8, 32], strides = [1, 1]} : vector<8x128xf32> to vector<8x32xf32>
    %199 = math.tanh %198 : vector<8x32xf32>
    %200 = vector.extract_strided_slice %197 {offsets = [0, 0], sizes = [8, 32], strides = [1, 1]} : vector<8x96xf32> to vector<8x32xf32>
    %201 = vector.extract_strided_slice %197 {offsets = [0, 32], sizes = [8, 32], strides = [1, 1]} : vector<8x96xf32> to vector<8x32xf32>
    %202 = vector.extract_strided_slice %197 {offsets = [0, 64], sizes = [8, 32], strides = [1, 1]} : vector<8x96xf32> to vector<8x32xf32>
    %203 = arith.mulf %201, %180 : vector<8x32xf32>
    %204 = arith.mulf %200, %199 : vector<8x32xf32>
    %205 = arith.addf %203, %204 : vector<8x32xf32>
    %206 = math.tanh %205 : vector<8x32xf32>
    %207 = arith.mulf %202, %206 : vector<8x32xf32>
    %208 = arith.addf %183, %207 : vector<8x32xf32>
    %c8_i32_57 = arith.constant 8 : i32
    %c0_58 = arith.constant 0 : index
    %c0_59 = arith.constant 0 : index
    %209 = vector.load %arg4[%c0_58, %c0_59] : memref<32x128xf32, #tpu.memory_space<vmem>>, vector<32x128xf32>
    %cst_60 = arith.constant dense<0.000000e+00> : vector<8x128xf32>
    %210 = tpu.matmul %208, %209, %cst_60 {dimension_numbers = #tpu.dot_dimension_numbers<[1], [0], [0], [1], [0, 0, 1, 1], [], []>} : vector<8x32xf32>, vector<32x128xf32>, vector<8x128xf32> -> vector<8x128xf32>
    %c0_61 = arith.constant 0 : index
    %c0_62 = arith.constant 0 : index
    %211 = vector.load %arg5[%c0_61, %c0_62] : memref<1x128xf32, #tpu.memory_space<vmem>>, vector<1x128xf32>
    %212 = vector.broadcast %211 : vector<1x128xf32> to vector<8x128xf32>
    %213 = arith.addf %210, %212 : vector<8x128xf32>
    %214 = tpu.iota {dimensions = array<i32: 1>} : vector<8x128xi32>
    %c4_i32_63 = arith.constant 4 : i32
    %215 = vector.broadcast %c4_i32_63 : i32 to vector<8x128xi32>
    %216 = arith.cmpi slt, %214, %215 : vector<8x128xi32>
    %cst_64 = arith.constant 5.000000e-01 : f32
    %217 = vector.broadcast %cst_64 : f32 to vector<8x128xf32>
    %218 = arith.mulf %217, %213 : vector<8x128xf32>
    %219 = math.tanh %218 : vector<8x128xf32>
    %cst_65 = arith.constant 5.000000e-01 : f32
    %220 = vector.broadcast %cst_65 : f32 to vector<8x128xf32>
    %221 = arith.mulf %220, %219 : vector<8x128xf32>
    %cst_66 = arith.constant 5.000000e-01 : f32
    %222 = vector.broadcast %cst_66 : f32 to vector<8x128xf32>
    %223 = arith.addf %221, %222 : vector<8x128xf32>
    %224 = arith.select %216, %223, %213 : vector<8x128xi1>, vector<8x128xf32>
    %c0_67 = arith.constant 0 : index
    %c0_68 = arith.constant 0 : index
    %225 = vector.load %arg6[%c0_67, %c0_68] : memref<8x128xf32, #tpu.memory_space<vmem>>, vector<8x128xf32>
    tpu.vector_store %arg6[%c0_67, %c0_68], %224 {strides = array<i32>} : memref<8x128xf32, #tpu.memory_space<vmem>>, vector<8x128xf32>,
    return
  }
}

</mosaic_0001>

<llo_original>
// kernel: tpu_custom_call.1
$region0: #{tpu_custom_call.1}
  #allocation0 [shape = 'u32[]', space=smem, size = 0x4, offset = 0x4, fixed_abs, tag = 'smem constant byte address 0x4 - core index']
  #allocation1 [shape = 'u32[144,128]{1,0:T(1,128)}', space=vmem, size = 0x12000, scoped, tag = 'internal scratch']
  #allocation2 [shape = 'f32[64,128]{1,0:T(8,128)}', space=vmem, size = 0x8000, scoped, tag = 'scratch operand']
  %s0 = inlined_call_operand.vmem [shape: f32[64,16], index: 0, kind: input, shape index: {}]
  %s1 = inlined_call_operand.vmem [shape: f32[16,128], index: 1, kind: input, shape index: {}]
  %s2 = inlined_call_operand.vmem [shape: f32[32,128], index: 2, kind: input, shape index: {}]
  %s3 = inlined_call_operand.vmem [shape: f32[1,128], index: 3, kind: input, shape index: {}]
  %s4 = inlined_call_operand.vmem [shape: f32[32,128], index: 4, kind: input, shape index: {}]
  %s5 = inlined_call_operand.vmem [shape: f32[1,128], index: 5, kind: input, shape index: {}]
  %s6 = inlined_call_operand.hbm [shape: f32[8,128], index: 6, kind: output, shape index: {}]
  %s7 = sld [smem:[#allocation0]]
  $region34: #{tpu_custom_call.1} parent=0
    _
  %s9 = ssub.s32 1, %s7
  %s10 = scalar_select 0, %s9, %s7
  $region1: #{tpu_custom_call.1} parent=0
    #allocation3 [shape = 'u8[4096]{0}', space=vmem, size = 0x1000, scoped, tag = 'output window, operand 0, single buffered']
    #allocation4 [shape = 's32[1]{0}', space=sflag, size = 0x4, scoped, tag = 'scoped memory for tpu_custom_call.1']
    %11 = vsyncpa [#allocation4], 0
    // Predicated region
    $region2: #{tpu_custom_call.1} parent=1 // pred_check
      _
    $region3: #{tpu_custom_call.1} parent=1 // pred_check_branch
      %13 = sbr.rel (0) target = $region5
    $region4: #{tpu_custom_call.1} parent=1 // pred_region
      _
    $region5: #{tpu_custom_call.1} parent=1 // pred_fallthru
      _
    // Predicated region
    $region6: #{tpu_custom_call.1} parent=1 // pred_check
      _
    $region7: #{tpu_custom_call.1} parent=1 // pred_check_branch
      %15 = sbr.rel (0) target = $region9
    $region8: #{tpu_custom_call.1} parent=1 // pred_region
      _
    $region9: #{tpu_custom_call.1} parent=1 // pred_fallthru
      _
    // Predicated region
    $region10: #{tpu_custom_call.1} parent=1 // pred_check
      _
    $region11: #{tpu_custom_call.1} parent=1 // pred_check_branch
      %17 = sbr.rel (0) target = $region13
    $region12: #{tpu_custom_call.1} parent=1 // pred_region
      _
    $region13: #{tpu_custom_call.1} parent=1 // pred_fallthru
      _
    // Predicated region
    $region14: #{tpu_custom_call.1} parent=1 // pred_check
      _
    $region15: #{tpu_custom_call.1} parent=1 // pred_check_branch
      %19 = sbr.rel (0) target = $region17
    $region16: #{tpu_custom_call.1} parent=1 // pred_region
      _
    $region17: #{tpu_custom_call.1} parent=1 // pred_fallthru
      _
    // Predicated region
    $region18: #{tpu_custom_call.1} parent=1 // pred_check
      _
    $region19: #{tpu_custom_call.1} parent=1 // pred_check_branch
      %21 = sbr.rel (0) target = $region21
    $region20: #{tpu_custom_call.1} parent=1 // pred_region
      _
    $region21: #{tpu_custom_call.1} parent=1 // pred_fallthru
      _
    // Predicated region
    $region22: #{tpu_custom_call.1} parent=1 // pred_check
      _
    $region23: #{tpu_custom_call.1} parent=1 // pred_check_branch
      %23 = sbr.rel (0) target = $region25
    $region24: #{tpu_custom_call.1} parent=1 // pred_region
      _
    $region25: #{tpu_custom_call.1} parent=1 // pred_fallthru
      _
    %v24 = vld [vmem:[%s0] sm:$0xff]
    %v25 = vld [vmem:[%s0 + $0x8] sm:$0xff]
    %v26 = vld [vmem:[%s0 + $0x10] sm:$0xff]
    %v27 = vld [vmem:[%s0 + $0x18] sm:$0xff]
    %v28 = vld [vmem:[%s0 + $0x20] sm:$0xff]
    %v29 = vld [vmem:[%s0 + $0x28] sm:$0xff]
    %v30 = vld [vmem:[%s0 + $0x30] sm:$0xff]
    %v31 = vld [vmem:[%s0 + $0x38] sm:$0xff]
    %v32 = vld [vmem:[%s1] sm:$0xff]
    %v33 = vld [vmem:[%s1 + $0x8] sm:$0xff]
    %v34 = vld [vmem:[%s3] sm:$0x1]
    %v36 = vlaneseq
    %v37 = vshrl.u32 %v36, 7
    %v38 = vsub.s32 0, %v37
    %v39 = vrot.slane %v34, %v38
    %vm41 = vcmask 130048
    %v43 = vsel %vm41, %v24, 0
    %v46 = vsel %vm41, %v25, 0
    %v49 = vsel %vm41, %v26, 0
    %v52 = vsel %vm41, %v27, 0
    %v55 = vsel %vm41, %v28, 0
    %v58 = vsel %vm41, %v29, 0
    %v61 = vsel %vm41, %v30, 0
    %v64 = vsel %vm41, %v31, 0
    %66 = vmatprep.subr.mxu0 0.0
    %67 = vmatpush1.msra.mxu0 %v32
    %68 = vmatprep.subr.mxu0 0.0
    %69 = vmatpush1.msra.mxu0 %v33
    %70 = vmatprep.subr.mxu0 0.0
    %71 = vmatpush1.msra.mxu0 0.0
    %72 = vmatprep.subr.mxu0 0.0
    %73 = vmatpush1.msra.mxu0 0.0
    %74 = vmatprep.subr.mxu0 0.0
    %75 = vmatpush1.msra.mxu0 0.0
    %76 = vmatprep.subr.mxu0 0.0
    %77 = vmatpush1.msra.mxu0 0.0
    %78 = vmatprep.subr.mxu0 0.0
    %79 = vmatpush1.msra.mxu0 0.0
    %80 = vmatprep.subr.mxu0 0.0
    %81 = vmatpush1.msra.mxu0 0.0
    %82 = vmatprep.subr.mxu0 0.0
    %83 = vmatpush1.msra.mxu0 0.0
    %84 = vmatprep.subr.mxu0 0.0
    %85 = vmatpush1.msra.mxu0 0.0
    %86 = vmatprep.subr.mxu0 0.0
    %87 = vmatpush1.msra.mxu0 0.0
    %88 = vmatprep.subr.mxu0 0.0
    %89 = vmatpush1.msra.mxu0 0.0
    %90 = vmatprep.subr.mxu0 0.0
    %91 = vmatpush1.msra.mxu0 0.0
    %92 = vmatprep.subr.mxu0 0.0
    %93 = vmatpush1.msra.mxu0 0.0
    %94 = vmatprep.subr.mxu0 0.0
    %95 = vmatpush1.msra.mxu0 0.0
    %96 = vmatprep.subr.mxu0 0.0
    %97 = vmatpush1.msra.mxu0 0.0
    %98 = vmatprep.subr.mxu0 0.0
    %99 = vmatpush1.msra.mxu0 0.0
    %100 = vmatprep.subr.mxu0 0.0
    %101 = vmatpush1.msra.mxu0 0.0
    %102 = vmatprep.subr.mxu0 0.0
    %103 = vmatpush1.msra.mxu0 0.0
    %104 = vmatprep.subr.mxu0 0.0
    %105 = vmatpush1.msra.mxu0 0.0
    %106 = vmatprep.subr.mxu0 0.0
    %107 = vmatpush1.msra.mxu0 0.0
    %108 = vmatprep.subr.mxu0 0.0
    %109 = vmatpush1.msra.mxu0 0.0
    %110 = vmatprep.subr.mxu0 0.0
    %111 = vmatpush1.msra.mxu0 0.0
    %112 = vmatprep.subr.mxu0 0.0
    %113 = vmatpush1.msra.mxu0 0.0
    %114 = vmatprep.subr.mxu0 0.0
    %115 = vmatpush1.msra.mxu0 0.0
    %116 = vmatprep.subr.mxu0 0.0
    %117 = vmatpush1.msra.mxu0 0.0
    %118 = vmatprep.subr.mxu0 0.0
    %119 = vmatpush1.msra.mxu0 0.0
    %120 = vmatprep.subr.mxu0 0.0
    %121 = vmatpush1.msra.mxu0 0.0
    %122 = vmatprep.subr.mxu0 0.0
    %123 = vmatpush1.msra.mxu0 0.0
    %124 = vmatprep.subr.mxu0 0.0
    %125 = vmatpush1.msra.mxu0 0.0
    %126 = vmatprep.subr.mxu0 0.0
    %127 = vmatpush1.msra.mxu0 0.0
    %128 = vmatprep.subr.mxu0 0.0
    %129 = vmatpush1.msra.mxu0 0.0
    %130 = vmatprep.mubr.f32.mxu0 0.0
    %131 = vmatmul.mubr.f32.gmra.mrb[0].mxu0 %v43
    %v132 = vpop.f32.mrb[0].mxu0
    %v133 = vadd.f32 %v39, %v132
    %v134 = vpop.f32.mrb[0].mxu0
    %135 = vmatprep.mubr.f32.mxu0 0.0
    %136 = vmatmul.mubr.f32.gmra.mrb[0].mxu0 %v46
    %v137 = vpop.f32.mrb[0].mxu0
    %v138 = vadd.f32 %v39, %v137
    %v139 = vpop.f32.mrb[0].mxu0
    %140 = vmatprep.mubr.f32.mxu0 0.0
    %141 = vmatmul.mubr.f32.gmra.mrb[0].mxu0 %v49
    %v142 = vpop.f32.mrb[0].mxu0
    %v143 = vadd.f32 %v39, %v142
    %v144 = vpop.f32.mrb[0].mxu0
    %145 = vmatprep.mubr.f32.mxu0 0.0
    %146 = vmatmul.mubr.f32.gmra.mrb[0].mxu0 %v52
    %v147 = vpop.f32.mrb[0].mxu0
    %v148 = vadd.f32 %v39, %v147
    %v149 = vpop.f32.mrb[0].mxu0
    %150 = vmatprep.mubr.f32.mxu0 0.0
    %151 = vmatmul.mubr.f32.gmra.mrb[0].mxu0 %v55
    %v152 = vpop.f32.mrb[0].mxu0
    %v153 = vadd.f32 %v39, %v152
    %v154 = vpop.f32.mrb[0].mxu0
    %155 = vmatprep.mubr.f32.mxu0 0.0
    %156 = vmatmul.mubr.f32.gmra.mrb[0].mxu0 %v58
    %v157 = vpop.f32.mrb[0].mxu0
    %v158 = vadd.f32 %v39, %v157
    %v159 = vpop.f32.mrb[0].mxu0
    %160 = vmatprep.mubr.f32.mxu0 0.0
    %161 = vmatmul.mubr.f32.gmra.mrb[0].mxu0 %v61
    %v162 = vpop.f32.mrb[0].mxu0
    %v163 = vadd.f32 %v39, %v162
    %v164 = vpop.f32.mrb[0].mxu0
    %165 = vmatprep.mubr.f32.mxu0 0.0
    %166 = vmatmul.mubr.f32.gmra.mrb[0].mxu0 %v64
    %v167 = vpop.f32.mrb[0].mxu0
    %v168 = vadd.f32 %v39, %v167
    %v169 = vpop.f32.mrb[0].mxu0
    %170 = vdwg.mxu0
    %171 = vst [vmem:[#allocation2] sm:$0xff] %v133
    %172 = vst [vmem:[#allocation2 + $0x8] sm:$0xff] %v138
    %173 = vst [vmem:[#allocation2 + $0x10] sm:$0xff] %v143
    %174 = vst [vmem:[#allocation2 + $0x18] sm:$0xff] %v148
    %175 = vst [vmem:[#allocation2 + $0x20] sm:$0xff] %v153
    %176 = vst [vmem:[#allocation2 + $0x28] sm:$0xff] %v158
    %177 = vst [vmem:[#allocation2 + $0x30] sm:$0xff] %v163
    %178 = vst [vmem:[#allocation2 + $0x38] sm:$0xff] %v168
    %v179 = vld [vmem:[%s2] sm:$0xff]
    %v180 = vld [vmem:[%s2 + $0x8] sm:$0xff]
    %v181 = vld [vmem:[%s2 + $0x10] sm:$0xff]
    %v182 = vld [vmem:[%s2 + $0x18] sm:$0xff]
    %v183 = vld [vmem:[#allocation2] sm:$0xff]
    %vm184 = vcmask 261120
    %v186 = vsel %vm184, 0.0, 0
    %188 = vmatprep.subr.mxu0 0.0
    %189 = vmatpush1.msra.mxu0 %v179
    %190 = vmatprep.subr.mxu0 0.0
    %191 = vmatpush1.msra.mxu0 %v180
    %192 = vmatprep.subr.mxu0 0.0
    %193 = vmatpush1.msra.mxu0 %v181
    %194 = vmatprep.subr.mxu0 0.0
    %195 = vmatpush1.msra.mxu0 %v182
    %196 = vmatprep.subr.mxu0 0.0
    %197 = vmatpush1.msra.mxu0 0.0
    %198 = vmatprep.subr.mxu0 0.0
    %199 = vmatpush1.msra.mxu0 0.0
    %200 = vmatprep.subr.mxu0 0.0
    %201 = vmatpush1.msra.mxu0 0.0
    %202 = vmatprep.subr.mxu0 0.0
    %203 = vmatpush1.msra.mxu0 0.0
    %204 = vmatprep.subr.mxu0 0.0
    %205 = vmatpush1.msra.mxu0 0.0
    %206 = vmatprep.subr.mxu0 0.0
    %207 = vmatpush1.msra.mxu0 0.0
    %208 = vmatprep.subr.mxu0 0.0
    %209 = vmatpush1.msra.mxu0 0.0
    %210 = vmatprep.subr.mxu0 0.0
    %211 = vmatpush1.msra.mxu0 0.0
    %212 = vmatprep.subr.mxu0 0.0
    %213 = vmatpush1.msra.mxu0 0.0
    %214 = vmatprep.subr.mxu0 0.0
    %215 = vmatpush1.msra.mxu0 0.0
    %216 = vmatprep.subr.mxu0 0.0
    %217 = vmatpush1.msra.mxu0 0.0
    %218 = vmatprep.subr.mxu0 0.0
    %219 = vmatpush1.msra.mxu0 0.0
    %220 = vmatprep.subr.mxu0 0.0
    %221 = vmatpush1.msra.mxu0 0.0
    %222 = vmatprep.subr.mxu0 0.0
    %223 = vmatpush1.msra.mxu0 0.0
    %224 = vmatprep.subr.mxu0 0.0
    %225 = vmatpush1.msra.mxu0 0.0
    %226 = vmatprep.subr.mxu0 0.0
    %227 = vmatpush1.msra.mxu0 0.0
    %228 = vmatprep.subr.mxu0 0.0
    %229 = vmatpush1.msra.mxu0 0.0
    %230 = vmatprep.subr.mxu0 0.0
    %231 = vmatpush1.msra.mxu0 0.0
    %232 = vmatprep.subr.mxu0 0.0
    %233 = vmatpush1.msra.mxu0 0.0
    %234 = vmatprep.subr.mxu0 0.0
    %235 = vmatpush1.msra.mxu0 0.0
    %236 = vmatprep.subr.mxu0 0.0
    %237 = vmatpush1.msra.mxu0 0.0
    %238 = vmatprep.subr.mxu0 0.0
    %239 = vmatpush1.msra.mxu0 0.0
    %240 = vmatprep.subr.mxu0 0.0
    %241 = vmatpush1.msra.mxu0 0.0
    %242 = vmatprep.subr.mxu0 0.0
    %243 = vmatpush1.msra.mxu0 0.0
    %244 = vmatprep.subr.mxu0 0.0
    %245 = vmatpush1.msra.mxu0 0.0
    %246 = vmatprep.subr.mxu0 0.0
    %247 = vmatpush1.msra.mxu0 0.0
    %248 = vmatprep.subr.mxu0 0.0
    %249 = vmatpush1.msra.mxu0 0.0
    %250 = vmatprep.subr.mxu0 0.0
    %251 = vmatpush1.msra.mxu0 0.0
    %252 = vmatprep.mubr.f32.mxu0 0.0
    %253 = vmatmul.mubr.f32.gmra.mrb[0].mxu0 %v186
    %v254 = vpop.f32.mrb[0].mxu0
    %v255 = vadd.f32 0.0, %v254
    %v256 = vpop.f32.mrb[0].mxu0
    %257 = vdwg.mxu0
    %v258 = vadd.f32 %v183, %v255
    %v259 = vmul.f32 %v258, 0.5
    %v260 = vtanh.pop %v259
    %v261 = vmul.f32 %v260, 0.5
    %v262 = vadd.f32 %v261, 0.5
    %v263 = vtanh.pop %v258
    %v264 = vmul.f32 %v262, 0.0
    %266 = vrot.lane.b32.xlu0 %v263, 32
    %v267 = vpop.permute.xlu0 %266
    %v269 = vmul.f32 %v262, %v267
    %271 = vrot.lane.b32.xlu0 %v269, 32
    %v272 = vpop.permute.xlu0 %271
    %v274 = vadd.f32 %v264, %v272
    %v275 = vtanh.pop %v274
    %277 = vrot.lane.b32.xlu0 %v275, 32
    %v278 = vpop.permute.xlu0 %277
    %v280 = vmul.f32 %v262, %v278
    %v281 = vadd.f32 %v280, 0.0
    %s282 = scalar_lea.vmem [#allocation2], 8
    %v283 = vld [vmem:[%s282] sm:$0xff]
    %285 = vrot.lane.b32.xlu0 %v280, 64
    %v286 = vpop.permute.xlu0 %285
    %v287 = vsel %vm184, %v286, 0
    %289 = vmatprep.subr.mxu0 0.0
    %290 = vmatpush1.msra.mxu0 %v179
    %291 = vmatprep.subr.mxu0 0.0
    %292 = vmatpush1.msra.mxu0 %v180
    %293 = vmatprep.subr.mxu0 0.0
    %294 = vmatpush1.msra.mxu0 %v181
    %295 = vmatprep.subr.mxu0 0.0
    %296 = vmatpush1.msra.mxu0 %v182
    %297 = vmatprep.subr.mxu0 0.0
    %298 = vmatpush1.msra.mxu0 0.0
    %299 = vmatprep.subr.mxu0 0.0
    %300 = vmatpush1.msra.mxu0 0.0
    %301 = vmatprep.subr.mxu0 0.0
    %302 = vmatpush1.msra.mxu0 0.0
    %303 = vmatprep.subr.mxu0 0.0
    %304 = vmatpush1.msra.mxu0 0.0
    %305 = vmatprep.subr.mxu0 0.0
    %306 = vmatpush1.msra.mxu0 0.0
    %307 = vmatprep.subr.mxu0 0.0
    %308 = vmatpush1.msra.mxu0 0.0
    %309 = vmatprep.subr.mxu0 0.0
    %310 = vmatpush1.msra.mxu0 0.0
    %311 = vmatprep.subr.mxu0 0.0
    %312 = vmatpush1.msra.mxu0 0.0
    %313 = vmatprep.subr.mxu0 0.0
    %314 = vmatpush1.msra.mxu0 0.0
    %315 = vmatprep.subr.mxu0 0.0
    %316 = vmatpush1.msra.mxu0 0.0
    %317 = vmatprep.subr.mxu0 0.0
    %318 = vmatpush1.msra.mxu0 0.0
    %319 = vmatprep.subr.mxu0 0.0
    %320 = vmatpush1.msra.mxu0 0.0
    %321 = vmatprep.subr.mxu0 0.0
    %322 = vmatpush1.msra.mxu0 0.0
    %323 = vmatprep.subr.mxu0 0.0
    %324 = vmatpush1.msra.mxu0 0.0
    %325 = vmatprep.subr.mxu0 0.0
    %326 = vmatpush1.msra.mxu0 0.0
    %327 = vmatprep.subr.mxu0 0.0
    %328 = vmatpush1.msra.mxu0 0.0
    %329 = vmatprep.subr.mxu0 0.0
    %330 = vmatpush1.msra.mxu0 0.0
    %331 = vmatprep.subr.mxu0 0.0
    %332 = vmatpush1.msra.mxu0 0.0
    %333 = vmatprep.subr.mxu0 0.0
    %334 = vmatpush1.msra.mxu0 0.0
    %335 = vmatprep.subr.mxu0 0.0
    %336 = vmatpush1.msra.mxu0 0.0
    %337 = vmatprep.subr.mxu0 0.0
    %338 = vmatpush1.msra.mxu0 0.0
    %339 = vmatprep.subr.mxu0 0.0
    %340 = vmatpush1.msra.mxu0 0.0
    %341 = vmatprep.subr.mxu0 0.0
    %342 = vmatpush1.msra.mxu0 0.0
    %343 = vmatprep.subr.mxu0 0.0
    %344 = vmatpush1.msra.mxu0 0.0
    %345 = vmatprep.subr.mxu0 0.0
    %346 = vmatpush1.msra.mxu0 0.0
    %347 = vmatprep.subr.mxu0 0.0
    %348 = vmatpush1.msra.mxu0 0.0
    %349 = vmatprep.subr.mxu0 0.0
    %350 = vmatpush1.msra.mxu0 0.0
    %351 = vmatprep.subr.mxu0 0.0
    %352 = vmatpush1.msra.mxu0 0.0
    %353 = vmatprep.mubr.f32.mxu0 0.0
    %354 = vmatmul.mubr.f32.gmra.mrb[0].mxu0 %v287
    %v355 = vpop.f32.mrb[0].mxu0
    %v356 = vadd.f32 0.0, %v355
    %v357 = vpop.f32.mrb[0].mxu0
    %358 = vdwg.mxu0
    %v359 = vadd.f32 %v283, %v356
    %v360 = vmul.f32 %v359, 0.5
    %v361 = vtanh.pop %v360
    %v362 = vmul.f32 %v361, 0.5
    %v363 = vadd.f32 %v362, 0.5
    %v364 = vtanh.pop %v359
    %v365 = vmul.f32 %v363, %v274
    %367 = vrot.lane.b32.xlu0 %v364, 32
    %v368 = vpop.permute.xlu0 %367
    %v370 = vmul.f32 %v363, %v368
    %372 = vrot.lane.b32.xlu0 %v370, 32
    %v373 = vpop.permute.xlu0 %372
    %v375 = vadd.f32 %v365, %v373
    %v376 = vtanh.pop %v375
    %378 = vrot.lane.b32.xlu0 %v376, 32
    %v379 = vpop.permute.xlu0 %378
    %v381 = vmul.f32 %v363, %v379
    %v382 = vadd.f32 %v281, %v381
    %s383 = scalar_lea.vmem [#allocation2], 16
    %v384 = vld [vmem:[%s383] sm:$0xff]
    %386 = vrot.lane.b32.xlu0 %v381, 64
    %v387 = vpop.permute.xlu0 %386
    %v388 = vsel %vm184, %v387, 0
    %390 = vmatprep.subr.mxu0 0.0
    %391 = vmatpush1.msra.mxu0 %v179
    %392 = vmatprep.subr.mxu0 0.0
    %393 = vmatpush1.msra.mxu0 %v180
    %394 = vmatprep.subr.mxu0 0.0
    %395 = vmatpush1.msra.mxu0 %v181
    %396 = vmatprep.subr.mxu0 0.0
    %397 = vmatpush1.msra.mxu0 %v182
    %398 = vmatprep.subr.mxu0 0.0
    %399 = vmatpush1.msra.mxu0 0.0
    %400 = vmatprep.subr.mxu0 0.0
    %401 = vmatpush1.msra.mxu0 0.0
    %402 = vmatprep.subr.mxu0 0.0
    %403 = vmatpush1.msra.mxu0 0.0
    %404 = vmatprep.subr.mxu0 0.0
    %405 = vmatpush1.msra.mxu0 0.0
    %406 = vmatprep.subr.mxu0 0.0
    %407 = vmatpush1.msra.mxu0 0.0
    %408 = vmatprep.subr.mxu0 0.0
    %409 = vmatpush1.msra.mxu0 0.0
    %410 = vmatprep.subr.mxu0 0.0
    %411 = vmatpush1.msra.mxu0 0.0
    %412 = vmatprep.subr.mxu0 0.0
    %413 = vmatpush1.msra.mxu0 0.0
    %414 = vmatprep.subr.mxu0 0.0
    %415 = vmatpush1.msra.mxu0 0.0
    %416 = vmatprep.subr.mxu0 0.0
    %417 = vmatpush1.msra.mxu0 0.0
    %418 = vmatprep.subr.mxu0 0.0
    %419 = vmatpush1.msra.mxu0 0.0
    %420 = vmatprep.subr.mxu0 0.0
    %421 = vmatpush1.msra.mxu0 0.0
    %422 = vmatprep.subr.mxu0 0.0
    %423 = vmatpush1.msra.mxu0 0.0
    %424 = vmatprep.subr.mxu0 0.0
    %425 = vmatpush1.msra.mxu0 0.0
    %426 = vmatprep.subr.mxu0 0.0
    %427 = vmatpush1.msra.mxu0 0.0
    %428 = vmatprep.subr.mxu0 0.0
    %429 = vmatpush1.msra.mxu0 0.0
    %430 = vmatprep.subr.mxu0 0.0
    %431 = vmatpush1.msra.mxu0 0.0
    %432 = vmatprep.subr.mxu0 0.0
    %433 = vmatpush1.msra.mxu0 0.0
    %434 = vmatprep.subr.mxu0 0.0
    %435 = vmatpush1.msra.mxu0 0.0
    %436 = vmatprep.subr.mxu0 0.0
    %437 = vmatpush1.msra.mxu0 0.0
    %438 = vmatprep.subr.mxu0 0.0
    %439 = vmatpush1.msra.mxu0 0.0
    %440 = vmatprep.subr.mxu0 0.0
    %441 = vmatpush1.msra.mxu0 0.0
    %442 = vmatprep.subr.mxu0 0.0
    %443 = vmatpush1.msra.mxu0 0.0
    %444 = vmatprep.subr.mxu0 0.0
    %445 = vmatpush1.msra.mxu0 0.0
    %446 = vmatprep.subr.mxu0 0.0
    %447 = vmatpush1.msra.mxu0 0.0
    %448 = vmatprep.subr.mxu0 0.0
    %449 = vmatpush1.msra.mxu0 0.0
    %450 = vmatprep.subr.mxu0 0.0
    %451 = vmatpush1.msra.mxu0 0.0
    %452 = vmatprep.subr.mxu0 0.0
    %453 = vmatpush1.msra.mxu0 0.0
    %454 = vmatprep.mubr.f32.mxu0 0.0
    %455 = vmatmul.mubr.f32.gmra.mrb[0].mxu0 %v388
    %v456 = vpop.f32.mrb[0].mxu0
    %v457 = vadd.f32 0.0, %v456
    %v458 = vpop.f32.mrb[0].mxu0
    %459 = vdwg.mxu0
    %v460 = vadd.f32 %v384, %v457
    %v461 = vmul.f32 %v460, 0.5
    %v462 = vtanh.pop %v461
    %v463 = vmul.f32 %v462, 0.5
    %v464 = vadd.f32 %v463, 0.5
    %v465 = vtanh.pop %v460
    %v466 = vmul.f32 %v464, %v375
    %468 = vrot.lane.b32.xlu0 %v465, 32
    %v469 = vpop.permute.xlu0 %468
    %v471 = vmul.f32 %v464, %v469
    %473 = vrot.lane.b32.xlu0 %v471, 32
    %v474 = vpop.permute.xlu0 %473
    %v476 = vadd.f32 %v466, %v474
    %v477 = vtanh.pop %v476
    %479 = vrot.lane.b32.xlu0 %v477, 32
    %v480 = vpop.permute.xlu0 %479
    %v482 = vmul.f32 %v464, %v480
    %v483 = vadd.f32 %v382, %v482
    %s484 = scalar_lea.vmem [#allocation2], 24
    %v485 = vld [vmem:[%s484] sm:$0xff]
    %487 = vrot.lane.b32.xlu0 %v482, 64
    %v488 = vpop.permute.xlu0 %487
    %v489 = vsel %vm184, %v488, 0
    %491 = vmatprep.subr.mxu0 0.0
    %492 = vmatpush1.msra.mxu0 %v179
    %493 = vmatprep.subr.mxu0 0.0
    %494 = vmatpush1.msra.mxu0 %v180
    %495 = vmatprep.subr.mxu0 0.0
    %496 = vmatpush1.msra.mxu0 %v181
    %497 = vmatprep.subr.mxu0 0.0
    %498 = vmatpush1.msra.mxu0 %v182
    %499 = vmatprep.subr.mxu0 0.0
    %500 = vmatpush1.msra.mxu0 0.0
    %501 = vmatprep.subr.mxu0 0.0
    %502 = vmatpush1.msra.mxu0 0.0
    %503 = vmatprep.subr.mxu0 0.0
    %504 = vmatpush1.msra.mxu0 0.0
    %505 = vmatprep.subr.mxu0 0.0
    %506 = vmatpush1.msra.mxu0 0.0
    %507 = vmatprep.subr.mxu0 0.0
    %508 = vmatpush1.msra.mxu0 0.0
    %509 = vmatprep.subr.mxu0 0.0
    %510 = vmatpush1.msra.mxu0 0.0
    %511 = vmatprep.subr.mxu0 0.0
    %512 = vmatpush1.msra.mxu0 0.0
    %513 = vmatprep.subr.mxu0 0.0
    %514 = vmatpush1.msra.mxu0 0.0
    %515 = vmatprep.subr.mxu0 0.0
    %516 = vmatpush1.msra.mxu0 0.0
    %517 = vmatprep.subr.mxu0 0.0
    %518 = vmatpush1.msra.mxu0 0.0
    %519 = vmatprep.subr.mxu0 0.0
    %520 = vmatpush1.msra.mxu0 0.0
    %521 = vmatprep.subr.mxu0 0.0
    %522 = vmatpush1.msra.mxu0 0.0
    %523 = vmatprep.subr.mxu0 0.0
    %524 = vmatpush1.msra.mxu0 0.0
    %525 = vmatprep.subr.mxu0 0.0
    %526 = vmatpush1.msra.mxu0 0.0
    %527 = vmatprep.subr.mxu0 0.0
    %528 = vmatpush1.msra.mxu0 0.0
    %529 = vmatprep.subr.mxu0 0.0
    %530 = vmatpush1.msra.mxu0 0.0
    %531 = vmatprep.subr.mxu0 0.0
    %532 = vmatpush1.msra.mxu0 0.0
    %533 = vmatprep.subr.mxu0 0.0
    %534 = vmatpush1.msra.mxu0 0.0
    %535 = vmatprep.subr.mxu0 0.0
    %536 = vmatpush1.msra.mxu0 0.0
    %537 = vmatprep.subr.mxu0 0.0
    %538 = vmatpush1.msra.mxu0 0.0
    %539 = vmatprep.subr.mxu0 0.0
    %540 = vmatpush1.msra.mxu0 0.0
    %541 = vmatprep.subr.mxu0 0.0
    %542 = vmatpush1.msra.mxu0 0.0
    %543 = vmatprep.subr.mxu0 0.0
    %544 = vmatpush1.msra.mxu0 0.0
    %545 = vmatprep.subr.mxu0 0.0
    %546 = vmatpush1.msra.mxu0 0.0
    %547 = vmatprep.subr.mxu0 0.0
    %548 = vmatpush1.msra.mxu0 0.0
    %549 = vmatprep.subr.mxu0 0.0
    %550 = vmatpush1.msra.mxu0 0.0
    %551 = vmatprep.subr.mxu0 0.0
    %552 = vmatpush1.msra.mxu0 0.0
    %553 = vmatprep.subr.mxu0 0.0
    %554 = vmatpush1.msra.mxu0 0.0
    %555 = vmatprep.mubr.f32.mxu0 0.0
    %556 = vmatmul.mubr.f32.gmra.mrb[0].mxu0 %v489
    %v557 = vpop.f32.mrb[0].mxu0
    %v558 = vadd.f32 0.0, %v557
    %v559 = vpop.f32.mrb[0].mxu0
    %560 = vdwg.mxu0
    %v561 = vadd.f32 %v485, %v558
    %v562 = vmul.f32 %v561, 0.5
    %v563 = vtanh.pop %v562
    %v564 = vmul.f32 %v563, 0.5
    %v565 = vadd.f32 %v564, 0.5
    %v566 = vtanh.pop %v561
    %v567 = vmul.f32 %v565, %v476
    %569 = vrot.lane.b32.xlu0 %v566, 32
    %v570 = vpop.permute.xlu0 %569
    %v572 = vmul.f32 %v565, %v570
    %574 = vrot.lane.b32.xlu0 %v572, 32
    %v575 = vpop.permute.xlu0 %574
    %v577 = vadd.f32 %v567, %v575
    %v578 = vtanh.pop %v577
    %580 = vrot.lane.b32.xlu0 %v578, 32
    %v581 = vpop.permute.xlu0 %580
    %v583 = vmul.f32 %v565, %v581
    %v584 = vadd.f32 %v483, %v583
    %s585 = scalar_lea.vmem [#allocation2], 32
    %v586 = vld [vmem:[%s585] sm:$0xff]
    %588 = vrot.lane.b32.xlu0 %v583, 64
    %v589 = vpop.permute.xlu0 %588
    %v590 = vsel %vm184, %v589, 0
    %592 = vmatprep.subr.mxu0 0.0
    %593 = vmatpush1.msra.mxu0 %v179
    %594 = vmatprep.subr.mxu0 0.0
    %595 = vmatpush1.msra.mxu0 %v180
    %596 = vmatprep.subr.mxu0 0.0
    %597 = vmatpush1.msra.mxu0 %v181
    %598 = vmatprep.subr.mxu0 0.0
    %599 = vmatpush1.msra.mxu0 %v182
    %600 = vmatprep.subr.mxu0 0.0
    %601 = vmatpush1.msra.mxu0 0.0
    %602 = vmatprep.subr.mxu0 0.0
    %603 = vmatpush1.msra.mxu0 0.0
    %604 = vmatprep.subr.mxu0 0.0
    %605 = vmatpush1.msra.mxu0 0.0
    %606 = vmatprep.subr.mxu0 0.0
    %607 = vmatpush1.msra.mxu0 0.0
    %608 = vmatprep.subr.mxu0 0.0
    %609 = vmatpush1.msra.mxu0 0.0
    %610 = vmatprep.subr.mxu0 0.0
    %611 = vmatpush1.msra.mxu0 0.0
    %612 = vmatprep.subr.mxu0 0.0
    %613 = vmatpush1.msra.mxu0 0.0
    %614 = vmatprep.subr.mxu0 0.0
    %615 = vmatpush1.msra.mxu0 0.0
    %616 = vmatprep.subr.mxu0 0.0
    %617 = vmatpush1.msra.mxu0 0.0
    %618 = vmatprep.subr.mxu0 0.0
    %619 = vmatpush1.msra.mxu0 0.0
    %620 = vmatprep.subr.mxu0 0.0
    %621 = vmatpush1.msra.mxu0 0.0
    %622 = vmatprep.subr.mxu0 0.0
    %623 = vmatpush1.msra.mxu0 0.0
    %624 = vmatprep.subr.mxu0 0.0
    %625 = vmatpush1.msra.mxu0 0.0
    %626 = vmatprep.subr.mxu0 0.0
    %627 = vmatpush1.msra.mxu0 0.0
    %628 = vmatprep.subr.mxu0 0.0
    %629 = vmatpush1.msra.mxu0 0.0
    %630 = vmatprep.subr.mxu0 0.0
    %631 = vmatpush1.msra.mxu0 0.0
    %632 = vmatprep.subr.mxu0 0.0
    %633 = vmatpush1.msra.mxu0 0.0
    %634 = vmatprep.subr.mxu0 0.0
    %635 = vmatpush1.msra.mxu0 0.0
    %636 = vmatprep.subr.mxu0 0.0
    %637 = vmatpush1.msra.mxu0 0.0
    %638 = vmatprep.subr.mxu0 0.0
    %639 = vmatpush1.msra.mxu0 0.0
    %640 = vmatprep.subr.mxu0 0.0
    %641 = vmatpush1.msra.mxu0 0.0
    %642 = vmatprep.subr.mxu0 0.0
    %643 = vmatpush1.msra.mxu0 0.0
    %644 = vmatprep.subr.mxu0 0.0
    %645 = vmatpush1.msra.mxu0 0.0
    %646 = vmatprep.subr.mxu0 0.0
    %647 = vmatpush1.msra.mxu0 0.0
    %648 = vmatprep.subr.mxu0 0.0
    %649 = vmatpush1.msra.mxu0 0.0
    %650 = vmatprep.subr.mxu0 0.0
    %651 = vmatpush1.msra.mxu0 0.0
    %652 = vmatprep.subr.mxu0 0.0
    %653 = vmatpush1.msra.mxu0 0.0
    %654 = vmatprep.subr.mxu0 0.0
    %655 = vmatpush1.msra.mxu0 0.0
    %656 = vmatprep.mubr.f32.mxu0 0.0
    %657 = vmatmul.mubr.f32.gmra.mrb[0].mxu0 %v590
    %v658 = vpop.f32.mrb[0].mxu0
    %v659 = vadd.f32 0.0, %v658
    %v660 = vpop.f32.mrb[0].mxu0
    %661 = vdwg.mxu0
    %v662 = vadd.f32 %v586, %v659
    %v663 = vmul.f32 %v662, 0.5
    %v664 = vtanh.pop %v663
    %v665 = vmul.f32 %v664, 0.5
    %v666 = vadd.f32 %v665, 0.5
    %v667 = vtanh.pop %v662
    %v668 = vmul.f32 %v666, %v577
    %670 = vrot.lane.b32.xlu0 %v667, 32
    %v671 = vpop.permute.xlu0 %670
    %v673 = vmul.f32 %v666, %v671
    %675 = vrot.lane.b32.xlu0 %v673, 32
    %v676 = vpop.permute.xlu0 %675
    %v678 = vadd.f32 %v668, %v676
    %v679 = vtanh.pop %v678
    %681 = vrot.lane.b32.xlu0 %v679, 32
    %v682 = vpop.permute.xlu0 %681
    %v684 = vmul.f32 %v666, %v682
    %v685 = vadd.f32 %v584, %v684
    %s686 = scalar_lea.vmem [#allocation2], 40
    %v687 = vld [vmem:[%s686] sm:$0xff]
    %689 = vrot.lane.b32.xlu0 %v684, 64
    %v690 = vpop.permute.xlu0 %689
    %v691 = vsel %vm184, %v690, 0
    %693 = vmatprep.subr.mxu0 0.0
    %694 = vmatpush1.msra.mxu0 %v179
    %695 = vmatprep.subr.mxu0 0.0
    %696 = vmatpush1.msra.mxu0 %v180
    %697 = vmatprep.subr.mxu0 0.0
    %698 = vmatpush1.msra.mxu0 %v181
    %699 = vmatprep.subr.mxu0 0.0
    %700 = vmatpush1.msra.mxu0 %v182
    %701 = vmatprep.subr.mxu0 0.0
    %702 = vmatpush1.msra.mxu0 0.0
    %703 = vmatprep.subr.mxu0 0.0
    %704 = vmatpush1.msra.mxu0 0.0
    %705 = vmatprep.subr.mxu0 0.0
    %706 = vmatpush1.msra.mxu0 0.0
    %707 = vmatprep.subr.mxu0 0.0
    %708 = vmatpush1.msra.mxu0 0.0
    %709 = vmatprep.subr.mxu0 0.0
    %710 = vmatpush1.msra.mxu0 0.0
    %711 = vmatprep.subr.mxu0 0.0
    %712 = vmatpush1.msra.mxu0 0.0
    %713 = vmatprep.subr.mxu0 0.0
    %714 = vmatpush1.msra.mxu0 0.0
    %715 = vmatprep.subr.mxu0 0.0
    %716 = vmatpush1.msra.mxu0 0.0
    %717 = vmatprep.subr.mxu0 0.0
    %718 = vmatpush1.msra.mxu0 0.0
    %719 = vmatprep.subr.mxu0 0.0
    %720 = vmatpush1.msra.mxu0 0.0
    %721 = vmatprep.subr.mxu0 0.0
    %722 = vmatpush1.msra.mxu0 0.0
    %723 = vmatprep.subr.mxu0 0.0
    %724 = vmatpush1.msra.mxu0 0.0
    %725 = vmatprep.subr.mxu0 0.0
    %726 = vmatpush1.msra.mxu0 0.0
    %727 = vmatprep.subr.mxu0 0.0
    %728 = vmatpush1.msra.mxu0 0.0
    %729 = vmatprep.subr.mxu0 0.0
    %730 = vmatpush1.msra.mxu0 0.0
    %731 = vmatprep.subr.mxu0 0.0
    %732 = vmatpush1.msra.mxu0 0.0
    %733 = vmatprep.subr.mxu0 0.0
    %734 = vmatpush1.msra.mxu0 0.0
    %735 = vmatprep.subr.mxu0 0.0
    %736 = vmatpush1.msra.mxu0 0.0
    %737 = vmatprep.subr.mxu0 0.0
    %738 = vmatpush1.msra.mxu0 0.0
    %739 = vmatprep.subr.mxu0 0.0
    %740 = vmatpush1.msra.mxu0 0.0
    %741 = vmatprep.subr.mxu0 0.0
    %742 = vmatpush1.msra.mxu0 0.0
    %743 = vmatprep.subr.mxu0 0.0
    %744 = vmatpush1.msra.mxu0 0.0
    %745 = vmatprep.subr.mxu0 0.0
    %746 = vmatpush1.msra.mxu0 0.0
    %747 = vmatprep.subr.mxu0 0.0
    %748 = vmatpush1.msra.mxu0 0.0
    %749 = vmatprep.subr.mxu0 0.0
    %750 = vmatpush1.msra.mxu0 0.0
    %751 = vmatprep.subr.mxu0 0.0
    %752 = vmatpush1.msra.mxu0 0.0
    %753 = vmatprep.subr.mxu0 0.0
    %754 = vmatpush1.msra.mxu0 0.0
    %755 = vmatprep.subr.mxu0 0.0
    %756 = vmatpush1.msra.mxu0 0.0
    %757 = vmatprep.mubr.f32.mxu0 0.0
    %758 = vmatmul.mubr.f32.gmra.mrb[0].mxu0 %v691
    %v759 = vpop.f32.mrb[0].mxu0
    %v760 = vadd.f32 0.0, %v759
    %v761 = vpop.f32.mrb[0].mxu0
    %762 = vdwg.mxu0
    %v763 = vadd.f32 %v687, %v760
    %v764 = vmul.f32 %v763, 0.5
    %v765 = vtanh.pop %v764
    %v766 = vmul.f32 %v765, 0.5
    %v767 = vadd.f32 %v766, 0.5
    %v768 = vtanh.pop %v763
    %v769 = vmul.f32 %v767, %v678
    %771 = vrot.lane.b32.xlu0 %v768, 32
    %v772 = vpop.permute.xlu0 %771
    %v774 = vmul.f32 %v767, %v772
    %776 = vrot.lane.b32.xlu0 %v774, 32
    %v777 = vpop.permute.xlu0 %776
    %v779 = vadd.f32 %v769, %v777
    %v780 = vtanh.pop %v779
    %782 = vrot.lane.b32.xlu0 %v780, 32
    %v783 = vpop.permute.xlu0 %782
    %v785 = vmul.f32 %v767, %v783
    %v786 = vadd.f32 %v685, %v785
    %s787 = scalar_lea.vmem [#allocation2], 48
    %v788 = vld [vmem:[%s787] sm:$0xff]
    %790 = vrot.lane.b32.xlu0 %v785, 64
    %v791 = vpop.permute.xlu0 %790
    %v792 = vsel %vm184, %v791, 0
    %794 = vmatprep.subr.mxu0 0.0
    %795 = vmatpush1.msra.mxu0 %v179
    %796 = vmatprep.subr.mxu0 0.0
    %797 = vmatpush1.msra.mxu0 %v180
    %798 = vmatprep.subr.mxu0 0.0
    %799 = vmatpush1.msra.mxu0 %v181
    %800 = vmatprep.subr.mxu0 0.0
    %801 = vmatpush1.msra.mxu0 %v182
    %802 = vmatprep.subr.mxu0 0.0
    %803 = vmatpush1.msra.mxu0 0.0
    %804 = vmatprep.subr.mxu0 0.0
    %805 = vmatpush1.msra.mxu0 0.0
    %806 = vmatprep.subr.mxu0 0.0
    %807 = vmatpush1.msra.mxu0 0.0
    %808 = vmatprep.subr.mxu0 0.0
    %809 = vmatpush1.msra.mxu0 0.0
    %810 = vmatprep.subr.mxu0 0.0
    %811 = vmatpush1.msra.mxu0 0.0
    %812 = vmatprep.subr.mxu0 0.0
    %813 = vmatpush1.msra.mxu0 0.0
    %814 = vmatprep.subr.mxu0 0.0
    %815 = vmatpush1.msra.mxu0 0.0
    %816 = vmatprep.subr.mxu0 0.0
    %817 = vmatpush1.msra.mxu0 0.0
    %818 = vmatprep.subr.mxu0 0.0
    %819 = vmatpush1.msra.mxu0 0.0
    %820 = vmatprep.subr.mxu0 0.0
    %821 = vmatpush1.msra.mxu0 0.0
    %822 = vmatprep.subr.mxu0 0.0
    %823 = vmatpush1.msra.mxu0 0.0
    %824 = vmatprep.subr.mxu0 0.0
    %825 = vmatpush1.msra.mxu0 0.0
    %826 = vmatprep.subr.mxu0 0.0
    %827 = vmatpush1.msra.mxu0 0.0
    %828 = vmatprep.subr.mxu0 0.0
    %829 = vmatpush1.msra.mxu0 0.0
    %830 = vmatprep.subr.mxu0 0.0
    %831 = vmatpush1.msra.mxu0 0.0
    %832 = vmatprep.subr.mxu0 0.0
    %833 = vmatpush1.msra.mxu0 0.0
    %834 = vmatprep.subr.mxu0 0.0
    %835 = vmatpush1.msra.mxu0 0.0
    %836 = vmatprep.subr.mxu0 0.0
    %837 = vmatpush1.msra.mxu0 0.0
    %838 = vmatprep.subr.mxu0 0.0
    %839 = vmatpush1.msra.mxu0 0.0
    %840 = vmatprep.subr.mxu0 0.0
    %841 = vmatpush1.msra.mxu0 0.0
    %842 = vmatprep.subr.mxu0 0.0
    %843 = vmatpush1.msra.mxu0 0.0
    %844 = vmatprep.subr.mxu0 0.0
    %845 = vmatpush1.msra.mxu0 0.0
    %846 = vmatprep.subr.mxu0 0.0
    %847 = vmatpush1.msra.mxu0 0.0
    %848 = vmatprep.subr.mxu0 0.0
    %849 = vmatpush1.msra.mxu0 0.0
    %850 = vmatprep.subr.mxu0 0.0
    %851 = vmatpush1.msra.mxu0 0.0
    %852 = vmatprep.subr.mxu0 0.0
    %853 = vmatpush1.msra.mxu0 0.0
    %854 = vmatprep.subr.mxu0 0.0
    %855 = vmatpush1.msra.mxu0 0.0
    %856 = vmatprep.subr.mxu0 0.0
    %857 = vmatpush1.msra.mxu0 0.0
    %858 = vmatprep.mubr.f32.mxu0 0.0
    %859 = vmatmul.mubr.f32.gmra.mrb[0].mxu0 %v792
    %v860 = vpop.f32.mrb[0].mxu0
    %v861 = vadd.f32 0.0, %v860
    %v862 = vpop.f32.mrb[0].mxu0
    %863 = vdwg.mxu0
    %v864 = vadd.f32 %v788, %v861
    %v865 = vmul.f32 %v864, 0.5
    %v866 = vtanh.pop %v865
    %v867 = vmul.f32 %v866, 0.5
    %v868 = vadd.f32 %v867, 0.5
    %v869 = vtanh.pop %v864
    %v870 = vmul.f32 %v868, %v779
    %872 = vrot.lane.b32.xlu0 %v869, 32
    %v873 = vpop.permute.xlu0 %872
    %v875 = vmul.f32 %v868, %v873
    %877 = vrot.lane.b32.xlu0 %v875, 32
    %v878 = vpop.permute.xlu0 %877
    %v880 = vadd.f32 %v870, %v878
    %v881 = vtanh.pop %v880
    %883 = vrot.lane.b32.xlu0 %v881, 32
    %v884 = vpop.permute.xlu0 %883
    %v886 = vmul.f32 %v868, %v884
    %v887 = vadd.f32 %v786, %v886
    %s888 = scalar_lea.vmem [#allocation2], 56
    %v889 = vld [vmem:[%s888] sm:$0xff]
    %891 = vrot.lane.b32.xlu0 %v886, 64
    %v892 = vpop.permute.xlu0 %891
    %v893 = vsel %vm184, %v892, 0
    %895 = vmatprep.subr.mxu0 0.0
    %896 = vmatpush1.msra.mxu0 %v179
    %897 = vmatprep.subr.mxu0 0.0
    %898 = vmatpush1.msra.mxu0 %v180
    %899 = vmatprep.subr.mxu0 0.0
    %900 = vmatpush1.msra.mxu0 %v181
    %901 = vmatprep.subr.mxu0 0.0
    %902 = vmatpush1.msra.mxu0 %v182
    %903 = vmatprep.subr.mxu0 0.0
    %904 = vmatpush1.msra.mxu0 0.0
    %905 = vmatprep.subr.mxu0 0.0
    %906 = vmatpush1.msra.mxu0 0.0
    %907 = vmatprep.subr.mxu0 0.0
    %908 = vmatpush1.msra.mxu0 0.0
    %909 = vmatprep.subr.mxu0 0.0
    %910 = vmatpush1.msra.mxu0 0.0
    %911 = vmatprep.subr.mxu0 0.0
    %912 = vmatpush1.msra.mxu0 0.0
    %913 = vmatprep.subr.mxu0 0.0
    %914 = vmatpush1.msra.mxu0 0.0
    %915 = vmatprep.subr.mxu0 0.0
    %916 = vmatpush1.msra.mxu0 0.0
    %917 = vmatprep.subr.mxu0 0.0
    %918 = vmatpush1.msra.mxu0 0.0
    %919 = vmatprep.subr.mxu0 0.0
    %920 = vmatpush1.msra.mxu0 0.0
    %921 = vmatprep.subr.mxu0 0.0
    %922 = vmatpush1.msra.mxu0 0.0
    %923 = vmatprep.subr.mxu0 0.0
    %924 = vmatpush1.msra.mxu0 0.0
    %925 = vmatprep.subr.mxu0 0.0
    %926 = vmatpush1.msra.mxu0 0.0
    %927 = vmatprep.subr.mxu0 0.0
    %928 = vmatpush1.msra.mxu0 0.0
    %929 = vmatprep.subr.mxu0 0.0
    %930 = vmatpush1.msra.mxu0 0.0
    %931 = vmatprep.subr.mxu0 0.0
    %932 = vmatpush1.msra.mxu0 0.0
    %933 = vmatprep.subr.mxu0 0.0
    %934 = vmatpush1.msra.mxu0 0.0
    %935 = vmatprep.subr.mxu0 0.0
    %936 = vmatpush1.msra.mxu0 0.0
    %937 = vmatprep.subr.mxu0 0.0
    %938 = vmatpush1.msra.mxu0 0.0
    %939 = vmatprep.subr.mxu0 0.0
    %940 = vmatpush1.msra.mxu0 0.0
    %941 = vmatprep.subr.mxu0 0.0
    %942 = vmatpush1.msra.mxu0 0.0
    %943 = vmatprep.subr.mxu0 0.0
    %944 = vmatpush1.msra.mxu0 0.0
    %945 = vmatprep.subr.mxu0 0.0
    %946 = vmatpush1.msra.mxu0 0.0
    %947 = vmatprep.subr.mxu0 0.0
    %948 = vmatpush1.msra.mxu0 0.0
    %949 = vmatprep.subr.mxu0 0.0
    %950 = vmatpush1.msra.mxu0 0.0
    %951 = vmatprep.subr.mxu0 0.0
    %952 = vmatpush1.msra.mxu0 0.0
    %953 = vmatprep.subr.mxu0 0.0
    %954 = vmatpush1.msra.mxu0 0.0
    %955 = vmatprep.subr.mxu0 0.0
    %956 = vmatpush1.msra.mxu0 0.0
    %957 = vmatprep.subr.mxu0 0.0
    %958 = vmatpush1.msra.mxu0 0.0
    %959 = vmatprep.mubr.f32.mxu0 0.0
    %960 = vmatmul.mubr.f32.gmra.mrb[0].mxu0 %v893
    %v961 = vpop.f32.mrb[0].mxu0
    %v962 = vadd.f32 0.0, %v961
    %v963 = vpop.f32.mrb[0].mxu0
    %964 = vdwg.mxu0
    %v965 = vadd.f32 %v889, %v962
    %v966 = vmul.f32 %v965, 0.5
    %v967 = vtanh.pop %v966
    %v968 = vmul.f32 %v967, 0.5
    %v969 = vadd.f32 %v968, 0.5
    %v970 = vtanh.pop %v965
    %v971 = vmul.f32 %v969, %v880
    %973 = vrot.lane.b32.xlu0 %v970, 32
    %v974 = vpop.permute.xlu0 %973
    %v976 = vmul.f32 %v969, %v974
    %978 = vrot.lane.b32.xlu0 %v976, 32
    %v979 = vpop.permute.xlu0 %978
    %v981 = vadd.f32 %v971, %v979
    %v982 = vtanh.pop %v981
    %984 = vrot.lane.b32.xlu0 %v982, 32
    %v985 = vpop.permute.xlu0 %984
    %v987 = vmul.f32 %v969, %v985
    %v988 = vadd.f32 %v887, %v987
    %v989 = vld [vmem:[%s4] sm:$0xff]
    %v990 = vld [vmem:[%s4 + $0x8] sm:$0xff]
    %v991 = vld [vmem:[%s4 + $0x10] sm:$0xff]
    %v992 = vld [vmem:[%s4 + $0x18] sm:$0xff]
    %v993 = vld [vmem:[%s5] sm:$0x1]
    %v995 = vlaneseq
    %v996 = vshrl.u32 %v995, 7
    %v997 = vsub.s32 0, %v996
    %v998 = vrot.slane %v993, %v997
    %1001 = vrot.lane.b32.xlu0 %v988, 64
    %v1002 = vpop.permute.xlu0 %1001
    %v1003 = vsel %vm184, %v1002, 0
    %1005 = vmatprep.subr.mxu0 0.0
    %1006 = vmatpush1.msra.mxu0 %v989
    %1007 = vmatprep.subr.mxu0 0.0
    %1008 = vmatpush1.msra.mxu0 %v990
    %1009 = vmatprep.subr.mxu0 0.0
    %1010 = vmatpush1.msra.mxu0 %v991
    %1011 = vmatprep.subr.mxu0 0.0
    %1012 = vmatpush1.msra.mxu0 %v992
    %1013 = vmatprep.subr.mxu0 0.0
    %1014 = vmatpush1.msra.mxu0 0.0
    %1015 = vmatprep.subr.mxu0 0.0
    %1016 = vmatpush1.msra.mxu0 0.0
    %1017 = vmatprep.subr.mxu0 0.0
    %1018 = vmatpush1.msra.mxu0 0.0
    %1019 = vmatprep.subr.mxu0 0.0
    %1020 = vmatpush1.msra.mxu0 0.0
    %1021 = vmatprep.subr.mxu0 0.0
    %1022 = vmatpush1.msra.mxu0 0.0
    %1023 = vmatprep.subr.mxu0 0.0
    %1024 = vmatpush1.msra.mxu0 0.0
    %1025 = vmatprep.subr.mxu0 0.0
    %1026 = vmatpush1.msra.mxu0 0.0
    %1027 = vmatprep.subr.mxu0 0.0
    %1028 = vmatpush1.msra.mxu0 0.0
    %1029 = vmatprep.subr.mxu0 0.0
    %1030 = vmatpush1.msra.mxu0 0.0
    %1031 = vmatprep.subr.mxu0 0.0
    %1032 = vmatpush1.msra.mxu0 0.0
    %1033 = vmatprep.subr.mxu0 0.0
    %1034 = vmatpush1.msra.mxu0 0.0
    %1035 = vmatprep.subr.mxu0 0.0
    %1036 = vmatpush1.msra.mxu0 0.0
    %1037 = vmatprep.subr.mxu0 0.0
    %1038 = vmatpush1.msra.mxu0 0.0
    %1039 = vmatprep.subr.mxu0 0.0
    %1040 = vmatpush1.msra.mxu0 0.0
    %1041 = vmatprep.subr.mxu0 0.0
    %1042 = vmatpush1.msra.mxu0 0.0
    %1043 = vmatprep.subr.mxu0 0.0
    %1044 = vmatpush1.msra.mxu0 0.0
    %1045 = vmatprep.subr.mxu0 0.0
    %1046 = vmatpush1.msra.mxu0 0.0
    %1047 = vmatprep.subr.mxu0 0.0
    %1048 = vmatpush1.msra.mxu0 0.0
    %1049 = vmatprep.subr.mxu0 0.0
    %1050 = vmatpush1.msra.mxu0 0.0
    %1051 = vmatprep.subr.mxu0 0.0
    %1052 = vmatpush1.msra.mxu0 0.0
    %1053 = vmatprep.subr.mxu0 0.0
    %1054 = vmatpush1.msra.mxu0 0.0
    %1055 = vmatprep.subr.mxu0 0.0
    %1056 = vmatpush1.msra.mxu0 0.0
    %1057 = vmatprep.subr.mxu0 0.0
    %1058 = vmatpush1.msra.mxu0 0.0
    %1059 = vmatprep.subr.mxu0 0.0
    %1060 = vmatpush1.msra.mxu0 0.0
    %1061 = vmatprep.subr.mxu0 0.0
    %1062 = vmatpush1.msra.mxu0 0.0
    %1063 = vmatprep.subr.mxu0 0.0
    %1064 = vmatpush1.msra.mxu0 0.0
    %1065 = vmatprep.subr.mxu0 0.0
    %1066 = vmatpush1.msra.mxu0 0.0
    %1067 = vmatprep.subr.mxu0 0.0
    %1068 = vmatpush1.msra.mxu0 0.0
    %1069 = vmatprep.mubr.f32.mxu0 0.0
    %1070 = vmatmul.mubr.f32.gmra.mrb[0].mxu0 %v1003
    %v1071 = vpop.f32.mrb[0].mxu0
    %v1072 = vadd.f32 %v998, %v1071
    %v1073 = vpop.f32.mrb[0].mxu0
    %1074 = vdwg.mxu0
    %v1075 = vlaneseq
    %v1076 = vand.u32 %v1075, 127
    %vm1077 = vcmp.lt.s32.totalorder %v1076, 4
    %v1078 = vmul.f32 %v1072, 0.5
    %v1079 = vtanh.pop %v1078
    %v1080 = vmul.f32 %v1079, 0.5
    %v1081 = vadd.f32 %v1080, 0.5
    %v1082 = vsel %vm1077, %v1081, %v1072
    %1083 = vst [vmem:[#allocation3] sm:$0xff] %v1082
    // Predicated region
    $region26: #{tpu_custom_call.1} parent=1 // pred_check
      _
    $region27: #{tpu_custom_call.1} parent=1 // pred_check_branch
      %1085 = sbr.rel (0) target = $region29
    $region28: #{tpu_custom_call.1} parent=1 // pred_region
      %s1087 = ssub.s32 128, 128
      %1088 = vsyncadd [#allocation4], %s1087
      %s1090 = sshll.u32 [#allocation3], 4
      %s1091 = int_to_ptr.vmem [resolvable:$true] %s1090
      %1093 = dma.vmem_to_hbm [thread:$0]  %s1091, 128, %s6, [#allocation4]
    $region29: #{tpu_custom_call.1} parent=1 // pred_fallthru
      _
    // Predicated region
    $region30: #{tpu_custom_call.1} parent=1 // pred_check
      _
    $region31: #{tpu_custom_call.1} parent=1 // pred_check_branch
      %1095 = sbr.rel (0) target = $region33
    $region32: #{tpu_custom_call.1} parent=1 // pred_region
      %1096 = dma.done [#allocation4], 128
    $region33: #{tpu_custom_call.1} parent=1 // pred_fallthru
      _
    %1097 = vsyncpa [#allocation4], 1

</llo_original>
